<compile_context>
chip_gen: v5e
topology: v5e:2x2
jax: 0.10.0
libtpu: 0.0.40
codegen_flags: <defaults>
</compile_context>

<pallas_src>
import math

import jax
import jax.numpy as jnp
from jax.experimental import pallas as pl
from jax.experimental.pallas import tpu as pltpu

_EPS = 1e-5


# ---------------------------------------------------------------------------
# Kernel: h = relu(x @ Wa + r @ Wr + b1); out = h @ W2 + b2
# ---------------------------------------------------------------------------
def _fused_mlp_kernel(x_ref, r_ref, wa_ref, wr_ref, b1_ref, w2_ref, b2_ref,
                      out_ref):
    # MXU-native bf16 matmul operands, f32 accumulation; bias/ReLU stay f32.
    x = x_ref[...].astype(jnp.bfloat16)
    r = r_ref[...].astype(jnp.bfloat16)
    h = (jnp.dot(x, wa_ref[...], preferred_element_type=jnp.float32)
         + jnp.dot(r, wr_ref[...], preferred_element_type=jnp.float32)
         + b1_ref[...])
    h = jnp.maximum(h, 0.0)
    out = jnp.dot(h, w2_ref[...], preferred_element_type=jnp.float32) + b2_ref[...]
    out_ref[...] = out.astype(out_ref.dtype)


def _fused_mlp(x, r3m, wa, wr, b1, w2, b2):
    B, E = x.shape
    R = r3m.shape[-1]
    HID = wa.shape[-1]
    O = w2.shape[-1]

    # Batch tile: sublane-aligned (multiple of 8), up to 128 rows per grid step.
    TB = min(128, ((B + 7) // 8) * 8)
    B_pad = pl.cdiv(B, TB) * TB
    if B_pad != B:
        x = jnp.pad(x, ((0, B_pad - B), (0, 0)))
        r3m = jnp.pad(r3m, ((0, B_pad - B), (0, 0)))

    # VMEM budget: resident weights + double-buffered activation tiles + margin.
    weight_bytes = (wa.size + wr.size) * 2 + (b1.size + w2.size + b2.size) * 4
    act_bytes = TB * (E + R + O) * 4
    vmem_limit = int(min(max(2 * weight_bytes + 4 * act_bytes + (2 << 20),
                             16 * 1024 * 1024),
                         56 * 1024 * 1024))  # headroom under v7x's 64 MiB

    out = pl.pallas_call(
        _fused_mlp_kernel,
        out_shape=jax.ShapeDtypeStruct((B_pad, O), jnp.float32),
        grid=(B_pad // TB,),
        in_specs=[
            pl.BlockSpec((TB, E), lambda i: (i, 0)),
            pl.BlockSpec((TB, R), lambda i: (i, 0)),
            # weights/biases: same block every step -> stay VMEM-resident
            pl.BlockSpec((E, HID), lambda i: (0, 0)),
            pl.BlockSpec((R, HID), lambda i: (0, 0)),
            pl.BlockSpec((1, HID), lambda i: (0, 0)),
            pl.BlockSpec((HID, O), lambda i: (0, 0)),
            pl.BlockSpec((1, O), lambda i: (0, 0)),
        ],
        out_specs=pl.BlockSpec((TB, O), lambda i: (i, 0)),
        compiler_params=pltpu.CompilerParams(
            dimension_semantics=("parallel",),
            vmem_limit_bytes=vmem_limit),
    )(x, r3m, wa.astype(jnp.bfloat16), wr.astype(jnp.bfloat16), b1, w2, b2)
    return out[:B]


# ---------------------------------------------------------------------------
# Wrapper: fold BN / v-proj / out-proj / fusion-BN / first Linear into weights
# ---------------------------------------------------------------------------
def avid_r3m_attention_forward(avid_feats, r3m_feats, params, *, num_heads):
    B, S, C = avid_feats.shape
    E = S * C
    R = r3m_feats.shape[-1]
    assert E % num_heads == 0, "embed dim must be divisible by num_heads"
    f32 = jnp.float32

    # eval-mode BatchNorm1d(avid_emb_dim) -> per-channel affine, tiled over seq
    abn_scale_c = params["abn_gamma"] / jnp.sqrt(params["abn_var"] + _EPS)
    abn_shift_c = params["abn_beta"] - params["abn_mean"] * abn_scale_c
    s_a = jnp.tile(abn_scale_c, S)            # (E,)  flatten order (s,c)->s*C+c
    t_a = jnp.tile(abn_shift_c, S)            # (E,)

    # MHA: softmax over a single key position == 1, so attn == v and
    # mha_out = (x @ Wv^T + bv) @ Wo^T + bo.  q/k projections are dead.
    ipw, ipb = params["mha_in_proj_w"], params["mha_in_proj_b"]
    WvT = ipw[2 * E:].T                       # (E, E)
    bv = ipb[2 * E:]
    WoT = params["mha_out_proj_w"].T          # (E, E)
    bo = params["mha_out_proj_b"]

    # fusion BatchNorm1d(E + R) split into avid / r3m halves
    fbn_scale = params["fbn_gamma"] / jnp.sqrt(params["fbn_var"] + _EPS)
    fbn_shift = params["fbn_beta"] - params["fbn_mean"] * fbn_scale
    fs_a, fb_a = fbn_scale[:E], fbn_shift[:E]
    fs_r, fb_r = fbn_scale[E:], fbn_shift[E:]

    W1 = params["fusion_w1"]                  # (HID, E+R)
    W1a, W1b = W1[:, :E].T, W1[:, E:].T       # (E, HID), (R, HID)
    b1 = params["fusion_b1"]
    W2T = params["fusion_w2"].T               # (HID, O)
    b2 = params["fusion_b2"]

    # ---- fold the whole affine chain of the AVID path into (E, HID) ----
    M = (s_a[:, None] * WvT) @ WoT            # x_raw @ M + bm == mha_out
    bm = (t_a @ WvT + bv) @ WoT + bo
    Wa = (M * fs_a[None, :]) @ W1a            # (E, HID)
    ba = (bm * fs_a + fb_a) @ W1a             # (HID,)

    # ---- fold the R3M path into (R, HID) ----
    Wr = fs_r[:, None] * W1b                  # (R, HID)
    br = fb_r @ W1b                           # (HID,)

    bias_h = (ba + br + b1).reshape(1, -1).astype(f32)

    x_raw = avid_feats.reshape(B, E)          # glue reshape (flatten seq)

    return _fused_mlp(x_raw.astype(f32), r3m_feats.astype(f32),
                      Wa.astype(f32), Wr.astype(f32), bias_h,
                      W2T.astype(f32), b2.reshape(1, -1).astype(f32))


# ---------------------------------------------------------------------------
# Parameter init + pure-JAX reference (mirrors the PyTorch forward semantics)
# ---------------------------------------------------------------------------
def init_params(key, *, avid_emb_dim, r3m_emb_dim, seq_len, hidden_dim,
                output_dim, mod_emb_size, backbone_feat_dim=16):
    E = avid_emb_dim * seq_len
    F = E + r3m_emb_dim
    ks = jax.random.split(key, 20)

    def nrm(k, shape, s=0.05):
        return jax.random.normal(k, shape, jnp.float32) * s

    return dict(
        # avid_batchnorm = nn.BatchNorm1d(avid_emb_dim)  (eval-mode stats)
        abn_gamma=1.0 + 0.1 * jax.random.normal(ks[0], (avid_emb_dim,), jnp.float32),
        abn_beta=nrm(ks[1], (avid_emb_dim,)),
        abn_mean=nrm(ks[2], (avid_emb_dim,)),
        abn_var=jnp.abs(1.0 + 0.1 * jax.random.normal(ks[3], (avid_emb_dim,), jnp.float32)),
        # mha = nn.MultiheadAttention(E, num_heads, batch_first=True)
        mha_in_proj_w=nrm(ks[4], (3 * E, E)),
        mha_in_proj_b=nrm(ks[5], (3 * E,)),
        mha_out_proj_w=nrm(ks[6], (E, E)),
        mha_out_proj_b=nrm(ks[7], (E,)),
        # feat_fusion = BN(E + r3m) -> Linear -> ReLU -> Linear
        fbn_gamma=1.0 + 0.1 * jax.random.normal(ks[8], (F,), jnp.float32),
        fbn_beta=nrm(ks[9], (F,)),
        fbn_mean=nrm(ks[10], (F,)),
        fbn_var=jnp.abs(1.0 + 0.1 * jax.random.normal(ks[11], (F,), jnp.float32)),
        fusion_w1=nrm(ks[12], (hidden_dim, F)),
        fusion_b1=nrm(ks[13], (hidden_dim,)),
        fusion_w2=nrm(ks[14], (output_dim, hidden_dim)),
        fusion_b2=nrm(ks[15], (output_dim,)),
        # downsample_video / downsample_audio (initialized; unused — see TODO)
        downsample_video_w=nrm(ks[16], (mod_emb_size, backbone_feat_dim)),
        downsample_video_b=nrm(ks[17], (mod_emb_size,)),
        downsample_audio_w=nrm(ks[18], (mod_emb_size, backbone_feat_dim)),
        downsample_audio_b=nrm(ks[19], (mod_emb_size,)),
    )


def ref_forward(avid_feats, r3m_feats, params, *, num_heads):
    """Pure-JAX mirror of the PyTorch forward semantics (for verification)."""
    B, S, C = avid_feats.shape
    E = S * C
    a = ((avid_feats - params["abn_mean"]) / jnp.sqrt(params["abn_var"] + _EPS)
         * params["abn_gamma"] + params["abn_beta"])
    x = a.reshape(B, E)

    ipw, ipb = params["mha_in_proj_w"], params["mha_in_proj_b"]
    q = x @ ipw[:E].T + ipb[:E]
    k = x @ ipw[E:2 * E].T + ipb[E:2 * E]
    v = x @ ipw[2 * E:].T + ipb[2 * E:]
    dh = E // num_heads
    qh = q.reshape(B, num_heads, 1, dh)
    kh = k.reshape(B, num_heads, 1, dh)
    vh = v.reshape(B, num_heads, 1, dh)
    s = jnp.einsum("bhqd,bhkd->bhqk", qh, kh) / math.sqrt(dh)
    w = jax.nn.softmax(s, axis=-1)
    attn = jnp.einsum("bhqk,bhkd->bhqd", w, vh).reshape(B, E)
    mha_out = attn @ params["mha_out_proj_w"].T + params["mha_out_proj_b"]

    fused = jnp.concatenate([mha_out, r3m_feats], axis=-1)
    f = ((fused - params["fbn_mean"]) / jnp.sqrt(params["fbn_var"] + _EPS)
         * params["fbn_gamma"] + params["fbn_beta"])
    h1 = jax.nn.relu(f @ params["fusion_w1"].T + params["fusion_b1"])
    return h1 @ params["fusion_w2"].T + params["fusion_b2"]


if __name__ == "__main__":
    # small shapes consistent with the module structure
    B = 2
    avid_emb_dim = 32
    seq_len = 2
    r3m_emb_dim = 16
    num_heads = 4
    hidden_dim = 32
    output_dim = 1
    mod_emb_size = 8

    key = jax.random.PRNGKey(0)
    k_avid, k_r3m, k_params = jax.random.split(key, 3)
    avid_feats = jax.random.normal(k_avid, (B, seq_len, avid_emb_dim), jnp.float32)
    r3m_feats = jax.random.normal(k_r3m, (B, r3m_emb_dim), jnp.float32)
    params = init_params(k_params, avid_emb_dim=avid_emb_dim, r3m_emb_dim=r3m_emb_dim,
                         seq_len=seq_len, hidden_dim=hidden_dim,
                         output_dim=output_dim, mod_emb_size=mod_emb_size)

    out = avid_r3m_attention_forward(avid_feats, r3m_feats, params,
                                     num_heads=num_heads)
    out = jax.block_until_ready(out)

    ref = ref_forward(avid_feats, r3m_feats, params, num_heads=num_heads)
    assert out.shape == (B, output_dim), out.shape
    # bf16 matmul operands (f32 accumulation) -> slightly relaxed tolerance
    if not jnp.allclose(out, ref, rtol=1e-2, atol=1e-2):
        raise ValueError(f"kernel/reference mismatch:\n{out}\nvs\n{ref}")

    print("KERNEL_OK")
</pallas_src>

<mosaic_0001>
module attributes {stable_mosaic.version = 11 : i64} {
  func.func @_fused_mlp_kernel(%arg0: i32, %arg1: memref<8x64xf32, #tpu.memory_space<vmem>>, %arg2: memref<8x16xf32, #tpu.memory_space<vmem>>, %arg3: memref<64x32xbf16, #tpu.memory_space<vmem>>, %arg4: memref<16x32xbf16, #tpu.memory_space<vmem>>, %arg5: memref<1x32xf32, #tpu.memory_space<vmem>>, %arg6: memref<32x1xf32, #tpu.memory_space<vmem>>, %arg7: memref<1x1xf32, #tpu.memory_space<vmem>>, %arg8: memref<8x1xf32, #tpu.memory_space<vmem>>) attributes {dimension_semantics = [#tpu.dimension_semantics<parallel>], iteration_bounds = array<i64: 1>, scalar_prefetch = 0 : i64, scratch_operands = 0 : i64, tpu.core_type = #tpu.core_type<tc>, window_params = [{transform_indices = @transform_0, window_bounds = array<i64: 8, 64>}, {transform_indices = @transform_1, window_bounds = array<i64: 8, 16>}, {pipeline_mode = #tpu.pipeline_mode<synchronous>, transform_indices = @transform_2, window_bounds = array<i64: 64, 32>}, {pipeline_mode = #tpu.pipeline_mode<synchronous>, transform_indices = @transform_3, window_bounds = array<i64: 16, 32>}, {pipeline_mode = #tpu.pipeline_mode<synchronous>, transform_indices = @transform_4, window_bounds = array<i64: 1, 32>}, {pipeline_mode = #tpu.pipeline_mode<synchronous>, transform_indices = @transform_5, window_bounds = array<i64: 32, 1>}, {pipeline_mode = #tpu.pipeline_mode<synchronous>, transform_indices = @transform_6, window_bounds = array<i64: 1, 1>}, {transform_indices = @transform_7, window_bounds = array<i64: 8, 1>}]} {
    %c0 = arith.constant 0 : index
    %c0_0 = arith.constant 0 : index
    %0 = vector.load %arg1[%c0, %c0_0] : memref<8x64xf32, #tpu.memory_space<vmem>>, vector<8x64xf32>
    %1 = arith.truncf %0 : vector<8x64xf32> to vector<8x64xbf16>
    %c0_1 = arith.constant 0 : index
    %c0_2 = arith.constant 0 : index
    %2 = vector.load %arg2[%c0_1, %c0_2] : memref<8x16xf32, #tpu.memory_space<vmem>>, vector<8x16xf32>
    %3 = arith.truncf %2 : vector<8x16xf32> to vector<8x16xbf16>
    %c0_3 = arith.constant 0 : index
    %c0_4 = arith.constant 0 : index
    %4 = vector.load %arg3[%c0_3, %c0_4] : memref<64x32xbf16, #tpu.memory_space<vmem>>, vector<64x32xbf16>
    %cst = arith.constant dense<0.000000e+00> : vector<8x32xf32>
    %5 = tpu.matmul %1, %4, %cst {dimension_numbers = #tpu.dot_dimension_numbers<[1], [0], [0], [1], [0, 0, 1, 1], [], []>} : vector<8x64xbf16>, vector<64x32xbf16>, vector<8x32xf32> -> vector<8x32xf32>
    %c0_5 = arith.constant 0 : index
    %c0_6 = arith.constant 0 : index
    %6 = vector.load %arg4[%c0_5, %c0_6] : memref<16x32xbf16, #tpu.memory_space<vmem>>, vector<16x32xbf16>
    %cst_7 = arith.constant dense<0.000000e+00> : vector<8x32xf32>
    %7 = tpu.matmul %3, %6, %cst_7 {dimension_numbers = #tpu.dot_dimension_numbers<[1], [0], [0], [1], [0, 0, 1, 1], [], []>} : vector<8x16xbf16>, vector<16x32xbf16>, vector<8x32xf32> -> vector<8x32xf32>
    %8 = arith.addf %5, %7 : vector<8x32xf32>
    %c0_8 = arith.constant 0 : index
    %c0_9 = arith.constant 0 : index
    %9 = vector.load %arg5[%c0_8, %c0_9] : memref<1x32xf32, #tpu.memory_space<vmem>>, vector<1x32xf32>
    %10 = vector.broadcast %9 : vector<1x32xf32> to vector<8x32xf32>
    %11 = arith.addf %8, %10 : vector<8x32xf32>
    %cst_10 = arith.constant 0.000000e+00 : f32
    %12 = vector.broadcast %cst_10 : f32 to vector<8x32xf32>
    %13 = arith.maximumf %11, %12 : vector<8x32xf32>
    %c0_11 = arith.constant 0 : index
    %c0_12 = arith.constant 0 : index
    %14 = vector.load %arg6[%c0_11, %c0_12] : memref<32x1xf32, #tpu.memory_space<vmem>>, vector<32x1xf32>
    %cst_13 = arith.constant dense<0.000000e+00> : vector<8x1xf32>
    %15 = tpu.matmul %13, %14, %cst_13 {dimension_numbers = #tpu.dot_dimension_numbers<[1], [0], [0], [1], [0, 0, 1, 1], [], []>} : vector<8x32xf32>, vector<32x1xf32>, vector<8x1xf32> -> vector<8x1xf32>
    %c0_14 = arith.constant 0 : index
    %c0_15 = arith.constant 0 : index
    %16 = vector.load %arg7[%c0_14, %c0_15] : memref<1x1xf32, #tpu.memory_space<vmem>>, vector<1x1xf32>
    %17 = vector.broadcast %16 : vector<1x1xf32> to vector<8x1xf32>
    %18 = arith.addf %15, %17 : vector<8x1xf32>
    %c0_16 = arith.constant 0 : index
    %c0_17 = arith.constant 0 : index
    %19 = vector.load %arg8[%c0_16, %c0_17] : memref<8x1xf32, #tpu.memory_space<vmem>>, vector<8x1xf32>
    tpu.vector_store %arg8[%c0_16, %c0_17], %18 {strides = array<i32>} : memref<8x1xf32, #tpu.memory_space<vmem>>, vector<8x1xf32>,
    return
  }
  func.func @transform_0(%arg0: i32) -> (i32, i32) {
    %c0_i32 = arith.constant 0 : i32
    %c0_i32_0 = arith.constant 0 : i32
    return %arg0, %c0_i32 : i32, i32
  }
  func.func @transform_1(%arg0: i32) -> (i32, i32) {
    %c0_i32 = arith.constant 0 : i32
    %c0_i32_0 = arith.constant 0 : i32
    return %arg0, %c0_i32 : i32, i32
  }
  func.func @transform_2(%arg0: i32) -> (i32, i32) {
    %c0_i32 = arith.constant 0 : i32
    %c0_i32_0 = arith.constant 0 : i32
    %c0_i32_1 = arith.constant 0 : i32
    return %c0_i32, %c0_i32_0 : i32, i32
  }
  func.func @transform_3(%arg0: i32) -> (i32, i32) {
    %c0_i32 = arith.constant 0 : i32
    %c0_i32_0 = arith.constant 0 : i32
    %c0_i32_1 = arith.constant 0 : i32
    return %c0_i32, %c0_i32_0 : i32, i32
  }
  func.func @transform_4(%arg0: i32) -> (i32, i32) {
    %c0_i32 = arith.constant 0 : i32
    %c0_i32_0 = arith.constant 0 : i32
    %c0_i32_1 = arith.constant 0 : i32
    return %c0_i32, %c0_i32_0 : i32, i32
  }
  func.func @transform_5(%arg0: i32) -> (i32, i32) {
    %c0_i32 = arith.constant 0 : i32
    %c0_i32_0 = arith.constant 0 : i32
    %c0_i32_1 = arith.constant 0 : i32
    return %c0_i32, %c0_i32_0 : i32, i32
  }
  func.func @transform_6(%arg0: i32) -> (i32, i32) {
    %c0_i32 = arith.constant 0 : i32
    %c0_i32_0 = arith.constant 0 : i32
    %c0_i32_1 = arith.constant 0 : i32
    return %c0_i32, %c0_i32_0 : i32, i32
  }
  func.func @transform_7(%arg0: i32) -> (i32, i32) {
    %c0_i32 = arith.constant 0 : i32
    %c0_i32_0 = arith.constant 0 : i32
    return %arg0, %c0_i32 : i32, i32
  }
}

</mosaic_0001>

<llo_original>
// kernel: tpu_custom_call.1
$region0: #{tpu_custom_call.1}
  #allocation0 [shape = 'u32[]', space=smem, size = 0x4, offset = 0x4, fixed_abs, tag = 'smem constant byte address 0x4 - core index']
  #allocation1 [shape = 'u32[72,128]{1,0:T(1,128)}', space=vmem, size = 0x9000, scoped, tag = 'internal scratch']
  #allocation2 [shape = 'f32[1,1]{1,0:T(1,128)S(1)}', space=vmem, size = 0x200, scoped, tag = 'scoped memory for tpu_custom_call.1']
  %s0 = inlined_call_operand.vmem [shape: f32[8,64], index: 0, kind: input, shape index: {}]
  %s1 = inlined_call_operand.vmem [shape: f32[8,16], index: 1, kind: input, shape index: {}]
  %s2 = inlined_call_operand.vmem [shape: bf16[64,32], index: 2, kind: input, shape index: {}]
  %s3 = inlined_call_operand.vmem [shape: bf16[16,32], index: 3, kind: input, shape index: {}]
  %s4 = inlined_call_operand.vmem [shape: f32[1,32], index: 4, kind: input, shape index: {}]
  %s5 = inlined_call_operand.vmem [shape: f32[32,1], index: 5, kind: input, shape index: {}]
  %s6 = inlined_call_operand.<no memory space> [shape: f32[1,1], index: 6, kind: input, shape index: {}]
  %s7 = inlined_call_operand.vmem [shape: f32[8,1], index: 7, kind: output, shape index: {}]
  %s8 = sld [smem:[#allocation0]]
  $region38: #{tpu_custom_call.1} parent=0
    _
  %s10 = ssub.s32 1, %s8
  %s11 = scalar_select 0, %s10, %s8
  %v12 = vstv %s6
  %13 = vst [vmem:[#allocation2] sm:$0x1] %v12
  // Predicated region
  $region2: #{tpu_custom_call.1} parent=0 // pred_check
    _
  $region3: #{tpu_custom_call.1} parent=0 // pred_check_branch
    %15 = sbr.rel (0) target = $region5
  $region4: #{tpu_custom_call.1} parent=0 // pred_region
    _
  $region5: #{tpu_custom_call.1} parent=0 // pred_fallthru
    _
  // Predicated region
  $region6: #{tpu_custom_call.1} parent=0 // pred_check
    _
  $region7: #{tpu_custom_call.1} parent=0 // pred_check_branch
    %17 = sbr.rel (0) target = $region9
  $region8: #{tpu_custom_call.1} parent=0 // pred_region
    _
  $region9: #{tpu_custom_call.1} parent=0 // pred_fallthru
    _
  // Predicated region
  $region10: #{tpu_custom_call.1} parent=0 // pred_check
    _
  $region11: #{tpu_custom_call.1} parent=0 // pred_check_branch
    %19 = sbr.rel (0) target = $region13
  $region12: #{tpu_custom_call.1} parent=0 // pred_region
    _
  $region13: #{tpu_custom_call.1} parent=0 // pred_fallthru
    _
  // Predicated region
  $region14: #{tpu_custom_call.1} parent=0 // pred_check
    _
  $region15: #{tpu_custom_call.1} parent=0 // pred_check_branch
    %21 = sbr.rel (0) target = $region17
  $region16: #{tpu_custom_call.1} parent=0 // pred_region
    _
  $region17: #{tpu_custom_call.1} parent=0 // pred_fallthru
    _
  // Predicated region
  $region18: #{tpu_custom_call.1} parent=0 // pred_check
    _
  $region19: #{tpu_custom_call.1} parent=0 // pred_check_branch
    %23 = sbr.rel (0) target = $region21
  $region20: #{tpu_custom_call.1} parent=0 // pred_region
    _
  $region21: #{tpu_custom_call.1} parent=0 // pred_fallthru
    _
  // Predicated region
  $region22: #{tpu_custom_call.1} parent=0 // pred_check
    _
  $region23: #{tpu_custom_call.1} parent=0 // pred_check_branch
    %25 = sbr.rel (0) target = $region25
  $region24: #{tpu_custom_call.1} parent=0 // pred_region
    _
  $region25: #{tpu_custom_call.1} parent=0 // pred_fallthru
    _
  // Predicated region
  $region26: #{tpu_custom_call.1} parent=0 // pred_check
    _
  $region27: #{tpu_custom_call.1} parent=0 // pred_check_branch
    %27 = sbr.rel (0) target = $region29
  $region28: #{tpu_custom_call.1} parent=0 // pred_region
    _
  $region29: #{tpu_custom_call.1} parent=0 // pred_fallthru
    _
  %v29 = vld [vmem:[%s0] sm:$0xff]
  %v30 = vpack.c.bf16 %v29, %v29
  %v31 = vld [vmem:[%s1] sm:$0xff]
  %v32 = vpack.c.bf16 %v31, %v31
  %v33 = vld [vmem:[%s2] sm:$0xf]
  %v34 = vld [vmem:[%s2 + $0x4] sm:$0xf]
  %v35 = vld [vmem:[%s2 + $0x8] sm:$0xf]
  %v36 = vld [vmem:[%s2 + $0xc] sm:$0xf]
  %v37 = vld [vmem:[%s2 + $0x10] sm:$0xf]
  %v38 = vld [vmem:[%s2 + $0x14] sm:$0xf]
  %v39 = vld [vmem:[%s2 + $0x18] sm:$0xf]
  %v40 = vld [vmem:[%s2 + $0x1c] sm:$0xf]
  %v41 = vld [vmem:[%s3] sm:$0xf]
  %v42 = vld [vmem:[%s3 + $0x4] sm:$0xf]
  %v45 = vunpack.c.l.b16 %v41
  %v46 = vunpack.c.l.b16 %v42
  %v47 = vpack.c.b16 %v46, %v45
  %vm49 = vcmask 130048
  %v51 = vsel %vm49, %v32, 0
  %53 = vmatpush.bf16.msra.mxu0 0
  %54 = vmatpush.bf16.msra.mxu0 0
  %55 = vmatpush.bf16.msra.mxu0 0
  %56 = vmatpush.bf16.msra.mxu0 0
  %57 = vmatpush.bf16.msra.mxu0 0
  %58 = vmatpush.bf16.msra.mxu0 0
  %59 = vmatpush.bf16.msra.mxu0 0
  %60 = vmatpush.bf16.msra.mxu0 %v47
  %61 = vmatmul.bf16.gmra.mxu0 %v51
  %v62 = vpop.f32.mrf.mxu0
  %v63 = vadd.f32 0.0, %v62
  %v64 = vpop.f32.mrf.mxu0
  %65 = vdwg.mxu0
  %v74 = vunpack.c.l.b16 %v33
  %v75 = vunpack.c.l.b16 %v34
  %v76 = vunpack.c.l.b16 %v35
  %v77 = vunpack.c.l.b16 %v36
  %v78 = vunpack.c.l.b16 %v37
  %v79 = vunpack.c.l.b16 %v38
  %v80 = vunpack.c.l.b16 %v39
  %v81 = vunpack.c.l.b16 %v40
  %v82 = vpack.c.b16 %v75, %v74
  %v83 = vpack.c.b16 %v77, %v76
  %v84 = vpack.c.b16 %v79, %v78
  %v85 = vpack.c.b16 %v81, %v80
  %vm90 = vcmask 523264
  %v92 = vsel %vm90, %v30, 0
  %94 = vmatpush.bf16.msra.mxu0 0
  %95 = vmatpush.bf16.msra.mxu0 0
  %96 = vmatpush.bf16.msra.mxu0 0
  %97 = vmatpush.bf16.msra.mxu0 0
  %98 = vmatpush.bf16.msra.mxu0 %v85
  %99 = vmatpush.bf16.msra.mxu0 %v84
  %100 = vmatpush.bf16.msra.mxu0 %v83
  %101 = vmatpush.bf16.msra.mxu0 %v82
  %102 = vmatmul.bf16.gmra.mxu0 %v92
  %v103 = vpop.f32.mrf.mxu0
  %v104 = vadd.f32 %v63, %v103
  %v105 = vpop.f32.mrf.mxu0
  %106 = vdwg.mxu0
  %v107 = vld [vmem:[%s4] sm:$0x1]
  %v109 = vperm.slane %v107, 0
  %v111 = vadd.f32 %v104, %v109
  %v112 = vmax.f32 %v111, 0.0
  %v113 = vld [vmem:[%s5] sm:$0xff]
  %v114 = vld [vmem:[%s5 + $0x8] sm:$0xff]
  %v115 = vld [vmem:[%s5 + $0x10] sm:$0xff]
  %v116 = vld [vmem:[%s5 + $0x18] sm:$0xff]
  %v117 = vld [vmem:[#allocation2] sm:$0x1]
  %v119 = vperm.slane %v117, 0
  %vm121 = vcmask 261120
  %v123 = vsel %vm121, %v112, 0
  %125 = vmatpush.msra.mxu0 0.0
  %126 = vmatpush.msra.mxu0 0.0
  %127 = vmatpush.msra.mxu0 0.0
  %128 = vmatpush.msra.mxu0 0.0
  %129 = vmatpush.msra.mxu0 0.0
  %130 = vmatpush.msra.mxu0 0.0
  %131 = vmatpush.msra.mxu0 0.0
  %132 = vmatpush.msra.mxu0 0.0
  %133 = vmatpush.msra.mxu0 0.0
  %134 = vmatpush.msra.mxu0 0.0
  %135 = vmatpush.msra.mxu0 0.0
  %136 = vmatpush.msra.mxu0 0.0
  %137 = vmatpush.msra.mxu0 %v116
  %138 = vmatpush.msra.mxu0 %v115
  %139 = vmatpush.msra.mxu0 %v114
  %140 = vmatpush.msra.mxu0 %v113
  %141 = vmatmul.f32.gmra.mxu0 %v123
  %v142 = vpop.f32.mrf.mxu0
  %v143 = vadd.f32 %v119, %v142
  %144 = vdwg.mxu0
  %vm145 = vcmask 7168
  %146 = vst.msk [vmem:[%s7] sm:$0xff] %vm145, %v143
  // Predicated region
  $region30: #{tpu_custom_call.1} parent=0 // pred_check
    _
  $region31: #{tpu_custom_call.1} parent=0 // pred_check_branch
    %148 = sbr.rel (0) target = $region33
  $region32: #{tpu_custom_call.1} parent=0 // pred_region
    _
  $region33: #{tpu_custom_call.1} parent=0 // pred_fallthru
    _
  // Predicated region
  $region34: #{tpu_custom_call.1} parent=0 // pred_check
    _
  $region35: #{tpu_custom_call.1} parent=0 // pred_check_branch
    %150 = sbr.rel (0) target = $region37
  $region36: #{tpu_custom_call.1} parent=0 // pred_region
    _
  $region37: #{tpu_custom_call.1} parent=0 // pred_fallthru
    _

</llo_original>
